<compile_context>
chip_gen: v7x
topology: tpu7x:2x2x1
jax: 0.10.0
libtpu: 0.0.40
codegen_flags: <defaults>
</compile_context>

<pallas_src>
import functools
import inspect

import numpy as np
import jax
import jax.numpy as jnp
from jax.experimental import pallas as pl
from jax.experimental.pallas import tpu as pltpu


def _round_up(x, m):
    return ((x + m - 1) // m) * m


def _sublane(dtype):
    # Minimum sublane tile for the second-to-last dim: 8 f32 / 16 bf16 / 32 int8-fp8.
    return max(8, 32 // np.dtype(dtype).itemsize)


def _supports_pipeline_mode():
    """Feature-detect BlockSpec(pipeline_mode=...) instead of try/except at call time."""
    try:
        sig = inspect.signature(pl.BlockSpec)
    except (TypeError, ValueError):
        return False
    return ("pipeline_mode" in sig.parameters) and hasattr(pl, "Buffered")


def _device_vmem_bytes():
    try:
        cap = getattr(pltpu.get_tpu_info(), "vmem_capacity_bytes", None)
        if cap:
            return int(cap)
    except Exception:  # hardware query only; never masks kernel errors
        pass
    return 64 * 1024 * 1024   # conservative default = v7x per-core VMEM


def _pick_token_tiling(M, sublane):
    """Pick (tm, n_tiles) minimising padding, respecting sublane packing, and biasing
    toward >=4 grid steps so v7x's two TensorCores both get work on the parallel axis."""
    prefer = 256
    if pl.cdiv(M, 256) < 4 and pl.cdiv(M, 128) >= 2:
        prefer = 128
    n_tiles = max(1, pl.cdiv(M, prefer))
    tm = _round_up(max(pl.cdiv(M, n_tiles), sublane), sublane)
    return tm, n_tiles


def _objret_kernel(x_ref,
                   w1_ref, b1_ref,      # PositionwiseFeedForward first linear
                   w2_ref, b2_ref,      # PositionwiseFeedForward second linear
                   g_ref, beta_ref,     # LayerNorm weight / bias
                   w3_ref, b3_ref,      # Mlp first linear
                   w4_ref, b4_ref,      # Mlp second linear
                   o_ref,
                   *, d_valid):
    """One token tile: PFF -> (+residual) -> LayerNorm -> Mlp.

    Matmul operands use the weight dtype (bf16 fast path by default); accumulation,
    LayerNorm statistics and GELU are f32.  `d_valid` is the true (unpadded) feature
    width used for the LN statistics.
    """
    mxu_dt = w1_ref.dtype

    # --- PositionwiseFeedForward: Linear -> ReLU -> Linear (f32 accumulation) ------
    h = jnp.dot(x_ref[...].astype(mxu_dt), w1_ref[...],
                preferred_element_type=jnp.float32)
    # Fused bias + ReLU + downcast: halves the live size of the [tm, d_hid] tile.
    h = jnp.maximum(h + b1_ref[...].astype(jnp.float32), 0.0).astype(mxu_dt)

    y = jnp.dot(h, w2_ref[...], preferred_element_type=jnp.float32)
    y = y + b2_ref[...].astype(jnp.float32)

    # --- dropout (identity at inference) + residual + LayerNorm (f32) --------------
    # Residual is re-read here (x_ref is resident, re-reading is free) so no f32 copy
    # of the input tile stays live across the two big matmuls above.
    z = y + x_ref[...].astype(jnp.float32)
    d_pad = z.shape[-1]
    if d_pad == d_valid:
        mean = jnp.mean(z, axis=-1, keepdims=True)
        centered = z - mean
        var = jnp.mean(jnp.square(centered), axis=-1, keepdims=True)
    else:
        # Padded lanes of z are exactly zero (zero-padded inputs / weights / biases),
        # so sums are unaffected; use the true divisor and mask the variance term.
        inv_d = 1.0 / d_valid
        mean = jnp.sum(z, axis=-1, keepdims=True) * inv_d
        lane = jax.lax.broadcasted_iota(jnp.int32, z.shape, dimension=1)
        centered = jnp.where(lane < d_valid, z - mean, 0.0)
        var = jnp.sum(jnp.square(centered), axis=-1, keepdims=True) * inv_d
    # NOTE: fully-padded token rows hit var=0 -> rsqrt(1e-5); they stay finite and are
    # sliced off by the wrapper — intentional, not a NaN path.
    zn = centered * jax.lax.rsqrt(var + 1e-5)
    zn = zn * g_ref[...].astype(jnp.float32) + beta_ref[...].astype(jnp.float32)

    # --- Mlp: Linear -> GELU(tanh, EUP slot) -> Linear ------------------------------
    m = jnp.dot(zn.astype(mxu_dt), w3_ref[...], preferred_element_type=jnp.float32)
    m = jax.nn.gelu(m + b3_ref[...].astype(jnp.float32), approximate=True)

    out = jnp.dot(m.astype(mxu_dt), w4_ref[...], preferred_element_type=jnp.float32)
    out = out + b4_ref[...].astype(jnp.float32)

    o_ref[...] = out.astype(o_ref.dtype)


def _make_call(kernel, *, M_p, tm, n_tiles, d_in_p, d_hid_p, d_mlp_p, d_out_p,
               out_dtype, vmem_limit, cost, supports_pm):
    if supports_pm:
        # Constant index_map -> fetched once; single-buffer to halve weight VMEM use.
        w_kw = dict(pipeline_mode=pl.Buffered(1))
        # Deeper buffering on the streamed x input only pays off on long grids (v5e HBM).
        x_kw = dict(pipeline_mode=pl.Buffered(3)) if n_tiles >= 8 else {}
    else:
        w_kw, x_kw = {}, {}

    full = lambda shape: pl.BlockSpec(shape, lambda i: (0,) * len(shape), **w_kw)

    return pl.pallas_call(
        kernel,
        out_shape=jax.ShapeDtypeStruct((M_p, d_out_p), out_dtype),
        grid_spec=pltpu.PrefetchScalarGridSpec(
            num_scalar_prefetch=0,
            grid=(n_tiles,),
            in_specs=[
                pl.BlockSpec((tm, d_in_p), lambda i: (i, 0), **x_kw),   # x tile
                full((d_in_p, d_hid_p)), full((1, d_hid_p)),            # w1, b1
                full((d_hid_p, d_in_p)), full((1, d_in_p)),             # w2, b2
                full((1, d_in_p)), full((1, d_in_p)),                   # ln gamma, beta
                full((d_in_p, d_mlp_p)), full((1, d_mlp_p)),            # w3, b3
                full((d_mlp_p, d_out_p)), full((1, d_out_p)),           # w4, b4
            ],
            out_specs=pl.BlockSpec((tm, d_out_p), lambda i: (i, 0)),
        ),
        compiler_params=pltpu.CompilerParams(
            dimension_semantics=("parallel",),
            vmem_limit_bytes=vmem_limit),
        cost_estimate=cost,
    )


def object_retrival_forward(x, params, *, mxu_dtype=jnp.bfloat16):
    """x: [B, N, d_in]  ->  [B, N, d_out].

    mxu_dtype: dtype for MXU operands (default bf16; pass None to keep f32 operands;
               fp8 dtypes are a v7x inference opt-in).  Weights are cast once at the
               wrapper, activations per-dot inside the kernel; accumulation / LN /
               GELU always run in f32.
    """
    B, N, d_in = x.shape
    w1, b1, w2, b2, g, beta, w3, b3, w4, b4 = params
    d_hid = w1.shape[1]
    d_mlp = w3.shape[1]
    d_out = w4.shape[1]

    if mxu_dtype is not None:
        w1, w2, w3, w4 = (w.astype(mxu_dtype) for w in (w1, w2, w3, w4))

    LANE = 128
    d_in_p = _round_up(d_in, LANE)
    d_hid_p = _round_up(d_hid, LANE)
    d_mlp_p = _round_up(d_mlp, LANE)
    d_out_p = _round_up(d_out, LANE)

    M = B * N
    sublane = max(_sublane(x.dtype), 8)
    tm, n_tiles = _pick_token_tiling(M, sublane)
    M_p = tm * n_tiles

    pad2 = lambda a, r, c: jnp.pad(a, ((0, r - a.shape[0]), (0, c - a.shape[1])))

    x2d = pad2(x.reshape(M, d_in), M_p, d_in_p)
    w1_p, b1_p = pad2(w1, d_in_p, d_hid_p), pad2(b1, 1, d_hid_p)
    w2_p, b2_p = pad2(w2, d_hid_p, d_in_p), pad2(b2, 1, d_in_p)
    g_p, beta_p = pad2(g, 1, d_in_p), pad2(beta, 1, d_in_p)   # gamma pad=0 zeroes pad lanes
    w3_p, b3_p = pad2(w3, d_in_p, d_mlp_p), pad2(b3, 1, d_mlp_p)
    w4_p, b4_p = pad2(w4, d_mlp_p, d_out_p), pad2(b4, 1, d_out_p)

    supports_pm = _supports_pipeline_mode()

    # --- VMEM budget: charge weights once when single-buffered, clamp to device VMEM ---
    w_item = np.dtype(w1_p.dtype).itemsize
    x_item = np.dtype(x.dtype).itemsize
    weight_bytes = w_item * (d_in_p * d_hid_p + d_hid_p * d_in_p +
                             d_in_p * d_mlp_p + d_mlp_p * d_out_p +
                             d_hid_p + 3 * d_in_p + d_mlp_p + d_out_p)
    weight_bufs = 1 if supports_pm else 2
    x_bufs = 3 if (supports_pm and n_tiles >= 8) else 2
    io_bytes = x_bufs * tm * d_in_p * x_item + 2 * tm * d_out_p * x_item
    act_bytes = 4 * tm * (d_hid_p + 3 * d_in_p + 2 * d_mlp_p + d_out_p)   # f32 live values
    vmem_need = weight_bufs * weight_bytes + io_bytes + act_bytes
    dev_vmem = _device_vmem_bytes()
    vmem_limit = int(min(max(int(1.3 * vmem_need), 32 * 1024 * 1024),
                         int(0.9 * dev_vmem)))

    cost = pl.CostEstimate(
        flops=2 * M * (d_in * d_hid + d_hid * d_in + d_in * d_mlp + d_mlp * d_out),
        transcendentals=M * (d_mlp + 1),            # gelu(tanh) per Mlp hidden elem + rsqrt/row
        bytes_accessed=M * (d_in + d_out) * x_item + weight_bytes,
    )

    kernel = functools.partial(_objret_kernel, d_valid=d_in)
    call = _make_call(kernel, M_p=M_p, tm=tm, n_tiles=n_tiles, d_in_p=d_in_p,
                      d_hid_p=d_hid_p, d_mlp_p=d_mlp_p, d_out_p=d_out_p,
                      out_dtype=x.dtype, vmem_limit=vmem_limit, cost=cost,
                      supports_pm=supports_pm)
    out2d = call(x2d, w1_p, b1_p, w2_p, b2_p, g_p, beta_p, w3_p, b3_p, w4_p, b4_p)
    return out2d[:M, :d_out].reshape(B, N, d_out)


def init_params(key, d_in, dtype=jnp.float32):
    d_hid = 4 * d_in          # PositionwiseFeedForward hidden
    d_mlp = 2 * d_in          # Mlp expansion=2
    d_out = d_in              # Mlp out_dim (== d_in; the original code elides it with `...`)

    ks = jax.random.split(key, 4)
    scale = 0.02
    w1 = scale * jax.random.normal(ks[0], (d_in, d_hid), dtype)
    b1 = jnp.zeros((1, d_hid), dtype)
    w2 = scale * jax.random.normal(ks[1], (d_hid, d_in), dtype)
    b2 = jnp.zeros((1, d_in), dtype)
    g = jnp.ones((1, d_in), dtype)
    beta = jnp.zeros((1, d_in), dtype)
    w3 = scale * jax.random.normal(ks[2], (d_in, d_mlp), dtype)
    b3 = jnp.zeros((1, d_mlp), dtype)
    w4 = scale * jax.random.normal(ks[3], (d_mlp, d_out), dtype)
    b4 = jnp.zeros((1, d_out), dtype)
    return (w1, b1, w2, b2, g, beta, w3, b3, w4, b4)


def _reference(x, params):
    """Pure-JAX f32 reference of the same forward (tanh GELU, matching the kernel)."""
    w1, b1, w2, b2, g, beta, w3, b3, w4, b4 = params
    residual = x
    h = jnp.maximum(x @ w1 + b1, 0.0)
    y = h @ w2 + b2
    z = y + residual
    mean = jnp.mean(z, axis=-1, keepdims=True)
    var = jnp.mean(jnp.square(z - mean), axis=-1, keepdims=True)
    zn = (z - mean) * jax.lax.rsqrt(var + 1e-5) * g + beta
    m = jax.nn.gelu(zn @ w3 + b3, approximate=True)
    return m @ w4 + b4


if __name__ == "__main__":
    key = jax.random.PRNGKey(0)
    B, N, d_in = 2, 8, 32

    kx, kp = jax.random.split(key)
    x = jax.random.normal(kx, (B, N, d_in), jnp.float32)
    params = init_params(kp, d_in)

    # Default fast path: bf16 MXU operands, f32 accumulation / LN / GELU.
    out_bf16 = jax.block_until_ready(object_retrival_forward(x, params))
    # f32-operand path for a tight numerical check against the reference.
    out_f32 = jax.block_until_ready(object_retrival_forward(x, params, mxu_dtype=None))

    ref = _reference(x, params)
    assert out_bf16.shape == (B, N, d_in), out_bf16.shape
    assert out_f32.shape == (B, N, d_in), out_f32.shape
    assert jnp.allclose(out_f32, ref, atol=1e-5, rtol=1e-5), "f32 path mismatch vs reference"
    assert jnp.allclose(out_bf16, ref, atol=5e-2, rtol=5e-2), "bf16 path mismatch vs reference"

    print("KERNEL_OK")
</pallas_src>

<mosaic_0001>
module attributes {stable_mosaic.version = 11 : i64} {
  func.func @_objret_kernel(%arg0: i32, %arg1: memref<16x128xf32, #tpu.memory_space<vmem>>, %arg2: memref<128x128xbf16, #tpu.memory_space<vmem>>, %arg3: memref<1x128xf32, #tpu.memory_space<vmem>>, %arg4: memref<128x128xbf16, #tpu.memory_space<vmem>>, %arg5: memref<1x128xf32, #tpu.memory_space<vmem>>, %arg6: memref<1x128xf32, #tpu.memory_space<vmem>>, %arg7: memref<1x128xf32, #tpu.memory_space<vmem>>, %arg8: memref<128x128xbf16, #tpu.memory_space<vmem>>, %arg9: memref<1x128xf32, #tpu.memory_space<vmem>>, %arg10: memref<128x128xbf16, #tpu.memory_space<vmem>>, %arg11: memref<1x128xf32, #tpu.memory_space<vmem>>, %arg12: memref<16x128xf32, #tpu.memory_space<vmem>>) attributes {dimension_semantics = [#tpu.dimension_semantics<parallel>], iteration_bounds = array<i64: 1>, scalar_prefetch = 0 : i64, scratch_operands = 0 : i64, tpu.core_type = #tpu.core_type<tc>, window_params = [{transform_indices = @transform_0, window_bounds = array<i64: 16, 128>}, {pipeline_mode = #tpu.pipeline_mode<synchronous>, transform_indices = @transform_1, window_bounds = array<i64: 128, 128>}, {pipeline_mode = #tpu.pipeline_mode<synchronous>, transform_indices = @transform_2, window_bounds = array<i64: 1, 128>}, {pipeline_mode = #tpu.pipeline_mode<synchronous>, transform_indices = @transform_3, window_bounds = array<i64: 128, 128>}, {pipeline_mode = #tpu.pipeline_mode<synchronous>, transform_indices = @transform_4, window_bounds = array<i64: 1, 128>}, {pipeline_mode = #tpu.pipeline_mode<synchronous>, transform_indices = @transform_5, window_bounds = array<i64: 1, 128>}, {pipeline_mode = #tpu.pipeline_mode<synchronous>, transform_indices = @transform_6, window_bounds = array<i64: 1, 128>}, {pipeline_mode = #tpu.pipeline_mode<synchronous>, transform_indices = @transform_7, window_bounds = array<i64: 128, 128>}, {pipeline_mode = #tpu.pipeline_mode<synchronous>, transform_indices = @transform_8, window_bounds = array<i64: 1, 128>}, {pipeline_mode = #tpu.pipeline_mode<synchronous>, transform_indices = @transform_9, window_bounds = array<i64: 128, 128>}, {pipeline_mode = #tpu.pipeline_mode<synchronous>, transform_indices = @transform_10, window_bounds = array<i64: 1, 128>}, {transform_indices = @transform_11, window_bounds = array<i64: 16, 128>}]} {
    %c0 = arith.constant 0 : index
    %c0_0 = arith.constant 0 : index
    %0 = vector.load %arg1[%c0, %c0_0] : memref<16x128xf32, #tpu.memory_space<vmem>>, vector<16x128xf32>
    %1 = arith.truncf %0 : vector<16x128xf32> to vector<16x128xbf16>
    %c0_1 = arith.constant 0 : index
    %c0_2 = arith.constant 0 : index
    %2 = vector.load %arg2[%c0_1, %c0_2] : memref<128x128xbf16, #tpu.memory_space<vmem>>, vector<128x128xbf16>
    %cst = arith.constant dense<0.000000e+00> : vector<16x128xf32>
    %3 = tpu.matmul %1, %2, %cst {dimension_numbers = #tpu.dot_dimension_numbers<[1], [0], [0], [1], [0, 0, 1, 1], [], []>} : vector<16x128xbf16>, vector<128x128xbf16>, vector<16x128xf32> -> vector<16x128xf32>
    %c0_3 = arith.constant 0 : index
    %c0_4 = arith.constant 0 : index
    %4 = vector.load %arg3[%c0_3, %c0_4] : memref<1x128xf32, #tpu.memory_space<vmem>>, vector<1x128xf32>
    %5 = vector.broadcast %4 : vector<1x128xf32> to vector<16x128xf32>
    %6 = arith.addf %3, %5 : vector<16x128xf32>
    %cst_5 = arith.constant 0.000000e+00 : f32
    %7 = vector.broadcast %cst_5 : f32 to vector<16x128xf32>
    %8 = arith.maximumf %6, %7 : vector<16x128xf32>
    %9 = arith.truncf %8 : vector<16x128xf32> to vector<16x128xbf16>
    %c0_6 = arith.constant 0 : index
    %c0_7 = arith.constant 0 : index
    %10 = vector.load %arg4[%c0_6, %c0_7] : memref<128x128xbf16, #tpu.memory_space<vmem>>, vector<128x128xbf16>
    %cst_8 = arith.constant dense<0.000000e+00> : vector<16x128xf32>
    %11 = tpu.matmul %9, %10, %cst_8 {dimension_numbers = #tpu.dot_dimension_numbers<[1], [0], [0], [1], [0, 0, 1, 1], [], []>} : vector<16x128xbf16>, vector<128x128xbf16>, vector<16x128xf32> -> vector<16x128xf32>
    %c0_9 = arith.constant 0 : index
    %c0_10 = arith.constant 0 : index
    %12 = vector.load %arg5[%c0_9, %c0_10] : memref<1x128xf32, #tpu.memory_space<vmem>>, vector<1x128xf32>
    %13 = vector.broadcast %12 : vector<1x128xf32> to vector<16x128xf32>
    %14 = arith.addf %11, %13 : vector<16x128xf32>
    %c0_11 = arith.constant 0 : index
    %c0_12 = arith.constant 0 : index
    %15 = vector.load %arg1[%c0_11, %c0_12] : memref<16x128xf32, #tpu.memory_space<vmem>>, vector<16x128xf32>
    %16 = arith.addf %14, %15 : vector<16x128xf32>
    %cst_13 = arith.constant dense<0.000000e+00> : vector<16xf32>
    %17 = vector.multi_reduction <add>, %16, %cst_13 [1] : vector<16x128xf32> to vector<16xf32>
    %18 = vector.shape_cast %17 : vector<16xf32> to vector<16x1xf32>
    %cst_14 = arith.constant 3.125000e-02 : f32
    %19 = vector.broadcast %cst_14 : f32 to vector<16x1xf32>
    %20 = arith.mulf %18, %19 : vector<16x1xf32>
    %21 = tpu.iota {dimensions = array<i32: 1>} : vector<16x128xi32>
    %c32_i32 = arith.constant 32 : i32
    %22 = vector.broadcast %c32_i32 : i32 to vector<16x128xi32>
    %23 = arith.cmpi slt, %21, %22 : vector<16x128xi32>
    %24 = vector.broadcast %20 : vector<16x1xf32> to vector<16x128xf32>
    %25 = arith.subf %16, %24 : vector<16x128xf32>
    %cst_15 = arith.constant 0.000000e+00 : f32
    %26 = vector.broadcast %cst_15 : f32 to vector<16x128xf32>
    %27 = arith.select %23, %25, %26 : vector<16x128xi1>, vector<16x128xf32>
    %28 = arith.mulf %27, %27 : vector<16x128xf32>
    %cst_16 = arith.constant dense<0.000000e+00> : vector<16xf32>
    %29 = vector.multi_reduction <add>, %28, %cst_16 [1] : vector<16x128xf32> to vector<16xf32>
    %30 = vector.shape_cast %29 : vector<16xf32> to vector<16x1xf32>
    %cst_17 = arith.constant 3.125000e-02 : f32
    %31 = vector.broadcast %cst_17 : f32 to vector<16x1xf32>
    %32 = arith.mulf %30, %31 : vector<16x1xf32>
    %cst_18 = arith.constant 9.99999974E-6 : f32
    %33 = vector.broadcast %cst_18 : f32 to vector<16x1xf32>
    %34 = arith.addf %32, %33 : vector<16x1xf32>
    %35 = math.rsqrt %34 : vector<16x1xf32>
    %36 = vector.broadcast %35 : vector<16x1xf32> to vector<16x128xf32>
    %37 = arith.mulf %27, %36 : vector<16x128xf32>
    %c0_19 = arith.constant 0 : index
    %c0_20 = arith.constant 0 : index
    %38 = vector.load %arg6[%c0_19, %c0_20] : memref<1x128xf32, #tpu.memory_space<vmem>>, vector<1x128xf32>
    %39 = vector.broadcast %38 : vector<1x128xf32> to vector<16x128xf32>
    %40 = arith.mulf %37, %39 : vector<16x128xf32>
    %c0_21 = arith.constant 0 : index
    %c0_22 = arith.constant 0 : index
    %41 = vector.load %arg7[%c0_21, %c0_22] : memref<1x128xf32, #tpu.memory_space<vmem>>, vector<1x128xf32>
    %42 = vector.broadcast %41 : vector<1x128xf32> to vector<16x128xf32>
    %43 = arith.addf %40, %42 : vector<16x128xf32>
    %44 = arith.truncf %43 : vector<16x128xf32> to vector<16x128xbf16>
    %c0_23 = arith.constant 0 : index
    %c0_24 = arith.constant 0 : index
    %45 = vector.load %arg8[%c0_23, %c0_24] : memref<128x128xbf16, #tpu.memory_space<vmem>>, vector<128x128xbf16>
    %cst_25 = arith.constant dense<0.000000e+00> : vector<16x128xf32>
    %46 = tpu.matmul %44, %45, %cst_25 {dimension_numbers = #tpu.dot_dimension_numbers<[1], [0], [0], [1], [0, 0, 1, 1], [], []>} : vector<16x128xbf16>, vector<128x128xbf16>, vector<16x128xf32> -> vector<16x128xf32>
    %c0_26 = arith.constant 0 : index
    %c0_27 = arith.constant 0 : index
    %47 = vector.load %arg9[%c0_26, %c0_27] : memref<1x128xf32, #tpu.memory_space<vmem>>, vector<1x128xf32>
    %48 = vector.broadcast %47 : vector<1x128xf32> to vector<16x128xf32>
    %49 = arith.addf %46, %48 : vector<16x128xf32>
    %50 = arith.mulf %49, %49 : vector<16x128xf32>
    %51 = arith.mulf %49, %50 : vector<16x128xf32>
    %cst_28 = arith.constant 4.471500e-02 : f32
    %52 = vector.broadcast %cst_28 : f32 to vector<16x128xf32>
    %53 = arith.mulf %52, %51 : vector<16x128xf32>
    %54 = arith.addf %49, %53 : vector<16x128xf32>
    %cst_29 = arith.constant 0.797884583 : f32
    %55 = vector.broadcast %cst_29 : f32 to vector<16x128xf32>
    %56 = arith.mulf %55, %54 : vector<16x128xf32>
    %57 = math.tanh %56 : vector<16x128xf32>
    %cst_30 = arith.constant 1.000000e+00 : f32
    %58 = vector.broadcast %cst_30 : f32 to vector<16x128xf32>
    %59 = arith.addf %58, %57 : vector<16x128xf32>
    %cst_31 = arith.constant 5.000000e-01 : f32
    %60 = vector.broadcast %cst_31 : f32 to vector<16x128xf32>
    %61 = arith.mulf %60, %59 : vector<16x128xf32>
    %62 = arith.mulf %49, %61 : vector<16x128xf32>
    %63 = arith.truncf %62 : vector<16x128xf32> to vector<16x128xbf16>
    %c0_32 = arith.constant 0 : index
    %c0_33 = arith.constant 0 : index
    %64 = vector.load %arg10[%c0_32, %c0_33] : memref<128x128xbf16, #tpu.memory_space<vmem>>, vector<128x128xbf16>
    %cst_34 = arith.constant dense<0.000000e+00> : vector<16x128xf32>
    %65 = tpu.matmul %63, %64, %cst_34 {dimension_numbers = #tpu.dot_dimension_numbers<[1], [0], [0], [1], [0, 0, 1, 1], [], []>} : vector<16x128xbf16>, vector<128x128xbf16>, vector<16x128xf32> -> vector<16x128xf32>
    %c0_35 = arith.constant 0 : index
    %c0_36 = arith.constant 0 : index
    %66 = vector.load %arg11[%c0_35, %c0_36] : memref<1x128xf32, #tpu.memory_space<vmem>>, vector<1x128xf32>
    %67 = vector.broadcast %66 : vector<1x128xf32> to vector<16x128xf32>
    %68 = arith.addf %65, %67 : vector<16x128xf32>
    %c0_37 = arith.constant 0 : index
    %c0_38 = arith.constant 0 : index
    %69 = vector.load %arg12[%c0_37, %c0_38] : memref<16x128xf32, #tpu.memory_space<vmem>>, vector<16x128xf32>
    tpu.vector_store %arg12[%c0_37, %c0_38], %68 {strides = array<i32>} : memref<16x128xf32, #tpu.memory_space<vmem>>, vector<16x128xf32>,
    return
  }
  func.func @transform_0(%arg0: i32) -> (i32, i32) {
    %c0_i32 = arith.constant 0 : i32
    %c0_i32_0 = arith.constant 0 : i32
    return %arg0, %c0_i32 : i32, i32
  }
  func.func @transform_1(%arg0: i32) -> (i32, i32) {
    %c0_i32 = arith.constant 0 : i32
    %c0_i32_0 = arith.constant 0 : i32
    %c0_i32_1 = arith.constant 0 : i32
    return %c0_i32, %c0_i32_0 : i32, i32
  }
  func.func @transform_2(%arg0: i32) -> (i32, i32) {
    %c0_i32 = arith.constant 0 : i32
    %c0_i32_0 = arith.constant 0 : i32
    %c0_i32_1 = arith.constant 0 : i32
    return %c0_i32, %c0_i32_0 : i32, i32
  }
  func.func @transform_3(%arg0: i32) -> (i32, i32) {
    %c0_i32 = arith.constant 0 : i32
    %c0_i32_0 = arith.constant 0 : i32
    %c0_i32_1 = arith.constant 0 : i32
    return %c0_i32, %c0_i32_0 : i32, i32
  }
  func.func @transform_4(%arg0: i32) -> (i32, i32) {
    %c0_i32 = arith.constant 0 : i32
    %c0_i32_0 = arith.constant 0 : i32
    %c0_i32_1 = arith.constant 0 : i32
    return %c0_i32, %c0_i32_0 : i32, i32
  }
  func.func @transform_5(%arg0: i32) -> (i32, i32) {
    %c0_i32 = arith.constant 0 : i32
    %c0_i32_0 = arith.constant 0 : i32
    %c0_i32_1 = arith.constant 0 : i32
    return %c0_i32, %c0_i32_0 : i32, i32
  }
  func.func @transform_6(%arg0: i32) -> (i32, i32) {
    %c0_i32 = arith.constant 0 : i32
    %c0_i32_0 = arith.constant 0 : i32
    %c0_i32_1 = arith.constant 0 : i32
    return %c0_i32, %c0_i32_0 : i32, i32
  }
  func.func @transform_7(%arg0: i32) -> (i32, i32) {
    %c0_i32 = arith.constant 0 : i32
    %c0_i32_0 = arith.constant 0 : i32
    %c0_i32_1 = arith.constant 0 : i32
    return %c0_i32, %c0_i32_0 : i32, i32
  }
  func.func @transform_8(%arg0: i32) -> (i32, i32) {
    %c0_i32 = arith.constant 0 : i32
    %c0_i32_0 = arith.constant 0 : i32
    %c0_i32_1 = arith.constant 0 : i32
    return %c0_i32, %c0_i32_0 : i32, i32
  }
  func.func @transform_9(%arg0: i32) -> (i32, i32) {
    %c0_i32 = arith.constant 0 : i32
    %c0_i32_0 = arith.constant 0 : i32
    %c0_i32_1 = arith.constant 0 : i32
    return %c0_i32, %c0_i32_0 : i32, i32
  }
  func.func @transform_10(%arg0: i32) -> (i32, i32) {
    %c0_i32 = arith.constant 0 : i32
    %c0_i32_0 = arith.constant 0 : i32
    %c0_i32_1 = arith.constant 0 : i32
    return %c0_i32, %c0_i32_0 : i32, i32
  }
  func.func @transform_11(%arg0: i32) -> (i32, i32) {
    %c0_i32 = arith.constant 0 : i32
    %c0_i32_0 = arith.constant 0 : i32
    return %arg0, %c0_i32 : i32, i32
  }
}

</mosaic_0001>

<llo_original>
// kernel: tpu_custom_call.1
$region0: #{tpu_custom_call.1}
  #allocation0 [shape = 'u32[]', space=smem, size = 0x4, offset = 0x4, fixed_abs, tag = 'smem constant byte address 0x4 - core index']
  #allocation1 [shape = 'u32[144,128]{1,0:T(1,128)}', space=vmem, size = 0x12000, scoped, tag = 'internal scratch']
  %s0 = inlined_call_operand.hbm [shape: f32[16,128], index: 0, kind: input, shape index: {}]
  %s1 = inlined_call_operand.hbm [shape: bf16[128,128], index: 1, kind: input, shape index: {}]
  %s2 = inlined_call_operand.vmem [shape: f32[1,128], index: 2, kind: input, shape index: {}]
  %s3 = inlined_call_operand.hbm [shape: bf16[128,128], index: 3, kind: input, shape index: {}]
  %s4 = inlined_call_operand.vmem [shape: f32[1,128], index: 4, kind: input, shape index: {}]
  %s5 = inlined_call_operand.vmem [shape: f32[1,128], index: 5, kind: input, shape index: {}]
  %s6 = inlined_call_operand.vmem [shape: f32[1,128], index: 6, kind: input, shape index: {}]
  %s7 = inlined_call_operand.hbm [shape: bf16[128,128], index: 7, kind: input, shape index: {}]
  %s8 = inlined_call_operand.vmem [shape: f32[1,128], index: 8, kind: input, shape index: {}]
  %s9 = inlined_call_operand.hbm [shape: bf16[128,128], index: 9, kind: input, shape index: {}]
  %s10 = inlined_call_operand.vmem [shape: f32[1,128], index: 10, kind: input, shape index: {}]
  %s11 = inlined_call_operand.hbm [shape: f32[16,128], index: 11, kind: output, shape index: {}]
  %s12 = sld [smem:[#allocation0]]
  $region74: #{tpu_custom_call.1} parent=0
    _
  %s14 = ssub.s32 1, %s12
  %s15 = scalar_select 0, %s14, %s12
  $region1: #{tpu_custom_call.1} parent=0
    #allocation2 [shape = 'u8[8192]{0}', space=vmem, size = 0x2000, scoped, tag = 'input window, operand 0, single buffered']
    #allocation3 [shape = 's32[1]{0}', space=sflag, size = 0x4, scoped, tag = 'scoped memory for tpu_custom_call.1']
    #allocation4 [shape = 's32[1]{0}', space=sflag, size = 0x4, scoped, tag = 'scoped memory for tpu_custom_call.1']
    #allocation5 [shape = 'u8[32768]{0}', space=vmem, size = 0x8000, scoped, tag = 'input window, operand 1, single buffered']
    #allocation6 [shape = 's32[1]{0}', space=sflag, size = 0x4, scoped, tag = 'scoped memory for tpu_custom_call.1']
    #allocation7 [shape = 'u8[32768]{0}', space=vmem, size = 0x8000, scoped, tag = 'input window, operand 3, single buffered']
    #allocation8 [shape = 'u8[32768]{0}', space=vmem, size = 0x8000, scoped, tag = 'input window, operand 7, single buffered']
    #allocation9 [shape = 's32[1]{0}', space=sflag, size = 0x4, scoped, tag = 'scoped memory for tpu_custom_call.1']
    #allocation10 [shape = 'u8[32768]{0}', space=vmem, size = 0x8000, scoped, tag = 'input window, operand 9, single buffered']
    #allocation11 [shape = 'u8[8192]{0}', space=vmem, size = 0x2000, scoped, tag = 'output window, operand 0, single buffered']
    %16 = vsyncpa [#allocation3], 0
    %17 = vsyncpa [#allocation6], 0
    %18 = vsyncpa [#allocation9], 0
    %19 = vsyncpa [#allocation4], 0
    // Predicated region
    $region2: #{tpu_custom_call.1} parent=1 // pred_check
      _
    $region3: #{tpu_custom_call.1} parent=1 // pred_check_branch
      %21 = sbr.rel (0) target = $region5
    $region4: #{tpu_custom_call.1} parent=1 // pred_region
      %s23 = ssub.s32 256, 256
      %24 = vsyncadd [#allocation3], %s23
      %s25 = sshll.u32 [#allocation2], 4
      %s26 = int_to_ptr.vmem [resolvable:$true] %s25
      %31 = dma.hbm_to_vmem [thread:$0]  %s0, 256, %s26, [#allocation3], 128, 128, 8
    $region5: #{tpu_custom_call.1} parent=1 // pred_fallthru
      _
    // Predicated region
    $region6: #{tpu_custom_call.1} parent=1 // pred_check
      _
    $region7: #{tpu_custom_call.1} parent=1 // pred_check_branch
      %33 = sbr.rel (0) target = $region9
    $region8: #{tpu_custom_call.1} parent=1 // pred_region
      %s35 = ssub.s32 1024, 1024
      %36 = vsyncadd [#allocation6], %s35
      %s37 = sshll.u32 [#allocation5], 4
      %s38 = int_to_ptr.vmem [resolvable:$true] %s37
      %43 = dma.hbm_to_vmem [thread:$0]  %s1, 1024, %s38, [#allocation6], 64, 64, 4
    $region9: #{tpu_custom_call.1} parent=1 // pred_fallthru
      _
    // Predicated region
    $region10: #{tpu_custom_call.1} parent=1 // pred_check
      _
    $region11: #{tpu_custom_call.1} parent=1 // pred_check_branch
      %45 = sbr.rel (0) target = $region13
    $region12: #{tpu_custom_call.1} parent=1 // pred_region
      _
    $region13: #{tpu_custom_call.1} parent=1 // pred_fallthru
      _
    // Predicated region
    $region14: #{tpu_custom_call.1} parent=1 // pred_check
      _
    $region15: #{tpu_custom_call.1} parent=1 // pred_check_branch
      %47 = sbr.rel (0) target = $region17
    $region16: #{tpu_custom_call.1} parent=1 // pred_region
      %s49 = ssub.s32 1024, 1024
      %50 = vsyncadd [#allocation6], %s49
      %s51 = sshll.u32 [#allocation7], 4
      %s52 = int_to_ptr.vmem [resolvable:$true] %s51
      %57 = dma.hbm_to_vmem [thread:$0]  %s3, 1024, %s52, [#allocation6], 64, 64, 4
    $region17: #{tpu_custom_call.1} parent=1 // pred_fallthru
      _
    // Predicated region
    $region18: #{tpu_custom_call.1} parent=1 // pred_check
      _
    $region19: #{tpu_custom_call.1} parent=1 // pred_check_branch
      %59 = sbr.rel (0) target = $region21
    $region20: #{tpu_custom_call.1} parent=1 // pred_region
      _
    $region21: #{tpu_custom_call.1} parent=1 // pred_fallthru
      _
    // Predicated region
    $region22: #{tpu_custom_call.1} parent=1 // pred_check
      _
    $region23: #{tpu_custom_call.1} parent=1 // pred_check_branch
      %61 = sbr.rel (0) target = $region25
    $region24: #{tpu_custom_call.1} parent=1 // pred_region
      _
    $region25: #{tpu_custom_call.1} parent=1 // pred_fallthru
      _
    // Predicated region
    $region26: #{tpu_custom_call.1} parent=1 // pred_check
      _
    $region27: #{tpu_custom_call.1} parent=1 // pred_check_branch
      %63 = sbr.rel (0) target = $region29
    $region28: #{tpu_custom_call.1} parent=1 // pred_region
      _
    $region29: #{tpu_custom_call.1} parent=1 // pred_fallthru
      _
    // Predicated region
    $region30: #{tpu_custom_call.1} parent=1 // pred_check
      _
    $region31: #{tpu_custom_call.1} parent=1 // pred_check_branch
      %65 = sbr.rel (0) target = $region33
    $region32: #{tpu_custom_call.1} parent=1 // pred_region
      %s67 = ssub.s32 1024, 1024
      %68 = vsyncadd [#allocation9], %s67
      %s69 = sshll.u32 [#allocation8], 4
      %s70 = int_to_ptr.vmem [resolvable:$true] %s69
      %75 = dma.hbm_to_vmem [thread:$0]  %s7, 1024, %s70, [#allocation9], 64, 64, 4
    $region33: #{tpu_custom_call.1} parent=1 // pred_fallthru
      _
    // Predicated region
    $region34: #{tpu_custom_call.1} parent=1 // pred_check
      _
    $region35: #{tpu_custom_call.1} parent=1 // pred_check_branch
      %77 = sbr.rel (0) target = $region37
    $region36: #{tpu_custom_call.1} parent=1 // pred_region
      _
    $region37: #{tpu_custom_call.1} parent=1 // pred_fallthru
      _
    // Predicated region
    $region38: #{tpu_custom_call.1} parent=1 // pred_check
      _
    $region39: #{tpu_custom_call.1} parent=1 // pred_check_branch
      %79 = sbr.rel (0) target = $region41
    $region40: #{tpu_custom_call.1} parent=1 // pred_region
      %s81 = ssub.s32 1024, 1024
      %82 = vsyncadd [#allocation9], %s81
      %s83 = sshll.u32 [#allocation10], 4
      %s84 = int_to_ptr.vmem [resolvable:$true] %s83
      %89 = dma.hbm_to_vmem [thread:$0]  %s9, 1024, %s84, [#allocation9], 64, 64, 4
    $region41: #{tpu_custom_call.1} parent=1 // pred_fallthru
      _
    // Predicated region
    $region42: #{tpu_custom_call.1} parent=1 // pred_check
      _
    $region43: #{tpu_custom_call.1} parent=1 // pred_check_branch
      %91 = sbr.rel (0) target = $region45
    $region44: #{tpu_custom_call.1} parent=1 // pred_region
      _
    $region45: #{tpu_custom_call.1} parent=1 // pred_fallthru
      _
    // Predicated region
    $region46: #{tpu_custom_call.1} parent=1 // pred_check
      _
    $region47: #{tpu_custom_call.1} parent=1 // pred_check_branch
      %93 = sbr.rel (0) target = $region49
    $region48: #{tpu_custom_call.1} parent=1 // pred_region
      %94 = dma.done [#allocation3], 256
    $region49: #{tpu_custom_call.1} parent=1 // pred_fallthru
      _
    // Predicated region
    $region50: #{tpu_custom_call.1} parent=1 // pred_check
      _
    $region51: #{tpu_custom_call.1} parent=1 // pred_check_branch
      %96 = sbr.rel (0) target = $region53
    $region52: #{tpu_custom_call.1} parent=1 // pred_region
      %97 = dma.done [#allocation6], 1024
    $region53: #{tpu_custom_call.1} parent=1 // pred_fallthru
      _
    // Predicated region
    $region54: #{tpu_custom_call.1} parent=1 // pred_check
      _
    $region55: #{tpu_custom_call.1} parent=1 // pred_check_branch
      %99 = sbr.rel (0) target = $region57
    $region56: #{tpu_custom_call.1} parent=1 // pred_region
      %100 = dma.done [#allocation6], 1024
    $region57: #{tpu_custom_call.1} parent=1 // pred_fallthru
      _
    // Predicated region
    $region58: #{tpu_custom_call.1} parent=1 // pred_check
      _
    $region59: #{tpu_custom_call.1} parent=1 // pred_check_branch
      %102 = sbr.rel (0) target = $region61
    $region60: #{tpu_custom_call.1} parent=1 // pred_region
      %103 = dma.done [#allocation9], 1024
    $region61: #{tpu_custom_call.1} parent=1 // pred_fallthru
      _
    // Predicated region
    $region62: #{tpu_custom_call.1} parent=1 // pred_check
      _
    $region63: #{tpu_custom_call.1} parent=1 // pred_check_branch
      %105 = sbr.rel (0) target = $region65
    $region64: #{tpu_custom_call.1} parent=1 // pred_region
      %106 = dma.done [#allocation9], 1024
    $region65: #{tpu_custom_call.1} parent=1 // pred_fallthru
      _
    %v108 = vld [vmem:[#allocation2] sm:$0xff]
    %v109 = vld [vmem:[#allocation2 + $0x8] sm:$0xff]
    %v110 = vpack.c.bf16 %v109, %v108
    %v111 = vld [vmem:[#allocation5] sm:$0xf]
    %v112 = vld [vmem:[#allocation5 + $0x4] sm:$0xf]
    %v113 = vld [vmem:[#allocation5 + $0x8] sm:$0xf]
    %v114 = vld [vmem:[#allocation5 + $0xc] sm:$0xf]
    %v115 = vld [vmem:[#allocation5 + $0x10] sm:$0xf]
    %v116 = vld [vmem:[#allocation5 + $0x14] sm:$0xf]
    %v117 = vld [vmem:[#allocation5 + $0x18] sm:$0xf]
    %v118 = vld [vmem:[#allocation5 + $0x1c] sm:$0xf]
    %v119 = vld [vmem:[#allocation5 + $0x20] sm:$0xf]
    %v120 = vld [vmem:[#allocation5 + $0x24] sm:$0xf]
    %v121 = vld [vmem:[#allocation5 + $0x28] sm:$0xf]
    %v122 = vld [vmem:[#allocation5 + $0x2c] sm:$0xf]
    %v123 = vld [vmem:[#allocation5 + $0x30] sm:$0xf]
    %v124 = vld [vmem:[#allocation5 + $0x34] sm:$0xf]
    %v125 = vld [vmem:[#allocation5 + $0x38] sm:$0xf]
    %v126 = vld [vmem:[#allocation5 + $0x3c] sm:$0xf]
    %v127 = vld [vmem:[%s2] sm:$0x1]
    %v129 = vlaneseq
    %v130 = vshrl.u32 %v129, 7
    %v131 = vsub.s32 0, %v130
    %v132 = vrot.slane %v127, %v131
    %v150 = vunpack.c.l.b16 %v111
    %v151 = vunpack.c.l.b16 %v112
    %v152 = vunpack.c.l.b16 %v113
    %v153 = vunpack.c.l.b16 %v114
    %v154 = vunpack.c.l.b16 %v115
    %v155 = vunpack.c.l.b16 %v116
    %v156 = vunpack.c.l.b16 %v117
    %v157 = vunpack.c.l.b16 %v118
    %v158 = vunpack.c.l.b16 %v119
    %v159 = vunpack.c.l.b16 %v120
    %v160 = vunpack.c.l.b16 %v121
    %v161 = vunpack.c.l.b16 %v122
    %v162 = vunpack.c.l.b16 %v123
    %v163 = vunpack.c.l.b16 %v124
    %v164 = vunpack.c.l.b16 %v125
    %v165 = vunpack.c.l.b16 %v126
    %v166 = vpack.c.b16 %v151, %v150
    %v167 = vpack.c.b16 %v153, %v152
    %v168 = vpack.c.b16 %v155, %v154
    %v169 = vpack.c.b16 %v157, %v156
    %v170 = vpack.c.b16 %v159, %v158
    %v171 = vpack.c.b16 %v161, %v160
    %v172 = vpack.c.b16 %v163, %v162
    %v173 = vpack.c.b16 %v165, %v164
    %182 = vmatprep.subr.bf16.mxu0 0
    %183 = vmatpush1.bf16.msra.mxu0 %v166
    %184 = vmatprep.subr.bf16.mxu0 0
    %185 = vmatpush1.bf16.msra.mxu0 %v167
    %186 = vmatprep.subr.bf16.mxu0 0
    %187 = vmatpush1.bf16.msra.mxu0 %v168
    %188 = vmatprep.subr.bf16.mxu0 0
    %189 = vmatpush1.bf16.msra.mxu0 %v169
    %190 = vmatprep.subr.bf16.mxu0 0
    %191 = vmatpush1.bf16.msra.mxu0 %v170
    %192 = vmatprep.subr.bf16.mxu0 0
    %193 = vmatpush1.bf16.msra.mxu0 %v171
    %194 = vmatprep.subr.bf16.mxu0 0
    %195 = vmatpush1.bf16.msra.mxu0 %v172
    %196 = vmatprep.subr.bf16.mxu0 0
    %197 = vmatpush1.bf16.msra.mxu0 %v173
    %198 = vmatprep.subr.bf16.mxu0 0
    %199 = vmatpush1.bf16.msra.mxu0 0
    %200 = vmatprep.subr.bf16.mxu0 0
    %201 = vmatpush1.bf16.msra.mxu0 0
    %202 = vmatprep.subr.bf16.mxu0 0
    %203 = vmatpush1.bf16.msra.mxu0 0
    %204 = vmatprep.subr.bf16.mxu0 0
    %205 = vmatpush1.bf16.msra.mxu0 0
    %206 = vmatprep.subr.bf16.mxu0 0
    %207 = vmatpush1.bf16.msra.mxu0 0
    %208 = vmatprep.subr.bf16.mxu0 0
    %209 = vmatpush1.bf16.msra.mxu0 0
    %210 = vmatprep.subr.bf16.mxu0 0
    %211 = vmatpush1.bf16.msra.mxu0 0
    %212 = vmatprep.subr.bf16.mxu0 0
    %213 = vmatpush1.bf16.msra.mxu0 0
    %214 = vmatprep.mubr.bf16.mxu0 0
    %215 = vmatmul.mubr.bf16.gmra.mrb[0].mxu0 %v110
    %v216 = vpop.f32.mrb[0].mxu0
    %v217 = vadd.f32 %v132, %v216
    %v218 = vpop.f32.mrb[0].mxu0
    %v219 = vpop.f32.mrb[0].mxu0
    %v220 = vadd.f32 %v132, %v219
    %v221 = vpop.f32.mrb[0].mxu0
    %222 = vdwg.mxu0
    %v223 = vmax.f32 %v217, 0.0
    %v224 = vmax.f32 %v220, 0.0
    %v225 = vpack.c.bf16 %v224, %v223
    %v226 = vld [vmem:[#allocation7] sm:$0xf]
    %v227 = vld [vmem:[#allocation7 + $0x4] sm:$0xf]
    %v228 = vld [vmem:[#allocation7 + $0x8] sm:$0xf]
    %v229 = vld [vmem:[#allocation7 + $0xc] sm:$0xf]
    %v230 = vld [vmem:[#allocation7 + $0x10] sm:$0xf]
    %v231 = vld [vmem:[#allocation7 + $0x14] sm:$0xf]
    %v232 = vld [vmem:[#allocation7 + $0x18] sm:$0xf]
    %v233 = vld [vmem:[#allocation7 + $0x1c] sm:$0xf]
    %v234 = vld [vmem:[#allocation7 + $0x20] sm:$0xf]
    %v235 = vld [vmem:[#allocation7 + $0x24] sm:$0xf]
    %v236 = vld [vmem:[#allocation7 + $0x28] sm:$0xf]
    %v237 = vld [vmem:[#allocation7 + $0x2c] sm:$0xf]
    %v238 = vld [vmem:[#allocation7 + $0x30] sm:$0xf]
    %v239 = vld [vmem:[#allocation7 + $0x34] sm:$0xf]
    %v240 = vld [vmem:[#allocation7 + $0x38] sm:$0xf]
    %v241 = vld [vmem:[#allocation7 + $0x3c] sm:$0xf]
    %v242 = vld [vmem:[%s4] sm:$0x1]
    %v244 = vlaneseq
    %v245 = vshrl.u32 %v244, 7
    %v246 = vsub.s32 0, %v245
    %v247 = vrot.slane %v242, %v246
    %v265 = vunpack.c.l.b16 %v226
    %v266 = vunpack.c.l.b16 %v227
    %v267 = vunpack.c.l.b16 %v228
    %v268 = vunpack.c.l.b16 %v229
    %v269 = vunpack.c.l.b16 %v230
    %v270 = vunpack.c.l.b16 %v231
    %v271 = vunpack.c.l.b16 %v232
    %v272 = vunpack.c.l.b16 %v233
    %v273 = vunpack.c.l.b16 %v234
    %v274 = vunpack.c.l.b16 %v235
    %v275 = vunpack.c.l.b16 %v236
    %v276 = vunpack.c.l.b16 %v237
    %v277 = vunpack.c.l.b16 %v238
    %v278 = vunpack.c.l.b16 %v239
    %v279 = vunpack.c.l.b16 %v240
    %v280 = vunpack.c.l.b16 %v241
    %v281 = vpack.c.b16 %v266, %v265
    %v282 = vpack.c.b16 %v268, %v267
    %v283 = vpack.c.b16 %v270, %v269
    %v284 = vpack.c.b16 %v272, %v271
    %v285 = vpack.c.b16 %v274, %v273
    %v286 = vpack.c.b16 %v276, %v275
    %v287 = vpack.c.b16 %v278, %v277
    %v288 = vpack.c.b16 %v280, %v279
    %297 = vmatprep.subr.bf16.mxu0 0
    %298 = vmatpush1.bf16.msra.mxu0 %v281
    %299 = vmatprep.subr.bf16.mxu0 0
    %300 = vmatpush1.bf16.msra.mxu0 %v282
    %301 = vmatprep.subr.bf16.mxu0 0
    %302 = vmatpush1.bf16.msra.mxu0 %v283
    %303 = vmatprep.subr.bf16.mxu0 0
    %304 = vmatpush1.bf16.msra.mxu0 %v284
    %305 = vmatprep.subr.bf16.mxu0 0
    %306 = vmatpush1.bf16.msra.mxu0 %v285
    %307 = vmatprep.subr.bf16.mxu0 0
    %308 = vmatpush1.bf16.msra.mxu0 %v286
    %309 = vmatprep.subr.bf16.mxu0 0
    %310 = vmatpush1.bf16.msra.mxu0 %v287
    %311 = vmatprep.subr.bf16.mxu0 0
    %312 = vmatpush1.bf16.msra.mxu0 %v288
    %313 = vmatprep.subr.bf16.mxu0 0
    %314 = vmatpush1.bf16.msra.mxu0 0
    %315 = vmatprep.subr.bf16.mxu0 0
    %316 = vmatpush1.bf16.msra.mxu0 0
    %317 = vmatprep.subr.bf16.mxu0 0
    %318 = vmatpush1.bf16.msra.mxu0 0
    %319 = vmatprep.subr.bf16.mxu0 0
    %320 = vmatpush1.bf16.msra.mxu0 0
    %321 = vmatprep.subr.bf16.mxu0 0
    %322 = vmatpush1.bf16.msra.mxu0 0
    %323 = vmatprep.subr.bf16.mxu0 0
    %324 = vmatpush1.bf16.msra.mxu0 0
    %325 = vmatprep.subr.bf16.mxu0 0
    %326 = vmatpush1.bf16.msra.mxu0 0
    %327 = vmatprep.subr.bf16.mxu0 0
    %328 = vmatpush1.bf16.msra.mxu0 0
    %329 = vmatprep.mubr.bf16.mxu0 0
    %330 = vmatmul.mubr.bf16.gmra.mrb[0].mxu0 %v225
    %v331 = vpop.f32.mrb[0].mxu0
    %v332 = vadd.f32 %v247, %v331
    %v333 = vpop.f32.mrb[0].mxu0
    %v334 = vpop.f32.mrb[0].mxu0
    %v335 = vadd.f32 %v247, %v334
    %v336 = vpop.f32.mrb[0].mxu0
    %337 = vdwg.mxu0
    %v338 = vadd.f32 %v332, %v108
    %v339 = vadd.f32 %v335, %v109
    %340 = vadd.xlane.f32.xlu0 %v338
    %v341 = vpop.xlane.xlu0 %340
    %342 = vadd.xlane.f32.xlu0 %v339
    %v343 = vpop.xlane.xlu0 %342
    %v344 = vmul.f32 %v341, 0.03125
    %v345 = vmul.f32 %v343, 0.03125
    %v346 = vlaneseq
    %v347 = vand.u32 %v346, 127
    %vm348 = vcmp.lt.s32.totalorder %v347, 32
    %v349 = vsub.f32 %v338, %v344
    %v350 = vsub.f32 %v339, %v345
    %v351 = vsel %vm348, %v349, 0.0
    %v352 = vsel %vm348, %v350, 0.0
    %v353 = vmul.f32 %v351, %v351
    %v354 = vmul.f32 %v352, %v352
    %355 = vadd.xlane.f32.xlu0 %v353
    %v356 = vpop.xlane.xlu0 %355
    %357 = vadd.xlane.f32.xlu0 %v354
    %v358 = vpop.xlane.xlu0 %357
    %v359 = vmul.f32 %v356, 0.03125
    %v360 = vmul.f32 %v358, 0.03125
    %v361 = vadd.f32 %v359, 1e-05
    %v362 = vadd.f32 %v360, 1e-05
    %v363 = vrsqrt.pop %v361
    %v364 = vrsqrt.pop %v362
    %v365 = vmul.f32 %v351, %v363
    %v366 = vmul.f32 %v352, %v364
    %v367 = vld [vmem:[%s5] sm:$0x1]
    %v369 = vlaneseq
    %v370 = vshrl.u32 %v369, 7
    %v371 = vsub.s32 0, %v370
    %v372 = vrot.slane %v367, %v371
    %v374 = vmul.f32 %v365, %v372
    %v375 = vmul.f32 %v366, %v372
    %v376 = vld [vmem:[%s6] sm:$0x1]
    %v378 = vlaneseq
    %v379 = vshrl.u32 %v378, 7
    %v380 = vsub.s32 0, %v379
    %v381 = vrot.slane %v376, %v380
    %v383 = vadd.f32 %v374, %v381
    %v384 = vadd.f32 %v375, %v381
    %v385 = vpack.c.bf16 %v384, %v383
    %v386 = vld [vmem:[#allocation8] sm:$0xf]
    %v387 = vld [vmem:[#allocation8 + $0x4] sm:$0xf]
    %v388 = vld [vmem:[#allocation8 + $0x8] sm:$0xf]
    %v389 = vld [vmem:[#allocation8 + $0xc] sm:$0xf]
    %v390 = vld [vmem:[#allocation8 + $0x10] sm:$0xf]
    %v391 = vld [vmem:[#allocation8 + $0x14] sm:$0xf]
    %v392 = vld [vmem:[#allocation8 + $0x18] sm:$0xf]
    %v393 = vld [vmem:[#allocation8 + $0x1c] sm:$0xf]
    %v394 = vld [vmem:[#allocation8 + $0x20] sm:$0xf]
    %v395 = vld [vmem:[#allocation8 + $0x24] sm:$0xf]
    %v396 = vld [vmem:[#allocation8 + $0x28] sm:$0xf]
    %v397 = vld [vmem:[#allocation8 + $0x2c] sm:$0xf]
    %v398 = vld [vmem:[#allocation8 + $0x30] sm:$0xf]
    %v399 = vld [vmem:[#allocation8 + $0x34] sm:$0xf]
    %v400 = vld [vmem:[#allocation8 + $0x38] sm:$0xf]
    %v401 = vld [vmem:[#allocation8 + $0x3c] sm:$0xf]
    %v402 = vld [vmem:[%s8] sm:$0x1]
    %v404 = vlaneseq
    %v405 = vshrl.u32 %v404, 7
    %v406 = vsub.s32 0, %v405
    %v407 = vrot.slane %v402, %v406
    %v425 = vunpack.c.l.b16 %v386
    %v426 = vunpack.c.l.b16 %v387
    %v427 = vunpack.c.l.b16 %v388
    %v428 = vunpack.c.l.b16 %v389
    %v429 = vunpack.c.l.b16 %v390
    %v430 = vunpack.c.l.b16 %v391
    %v431 = vunpack.c.l.b16 %v392
    %v432 = vunpack.c.l.b16 %v393
    %v433 = vunpack.c.l.b16 %v394
    %v434 = vunpack.c.l.b16 %v395
    %v435 = vunpack.c.l.b16 %v396
    %v436 = vunpack.c.l.b16 %v397
    %v437 = vunpack.c.l.b16 %v398
    %v438 = vunpack.c.l.b16 %v399
    %v439 = vunpack.c.l.b16 %v400
    %v440 = vunpack.c.l.b16 %v401
    %v441 = vpack.c.b16 %v426, %v425
    %v442 = vpack.c.b16 %v428, %v427
    %v443 = vpack.c.b16 %v430, %v429
    %v444 = vpack.c.b16 %v432, %v431
    %v445 = vpack.c.b16 %v434, %v433
    %v446 = vpack.c.b16 %v436, %v435
    %v447 = vpack.c.b16 %v438, %v437
    %v448 = vpack.c.b16 %v440, %v439
    %457 = vmatprep.subr.bf16.mxu0 0
    %458 = vmatpush1.bf16.msra.mxu0 %v441
    %459 = vmatprep.subr.bf16.mxu0 0
    %460 = vmatpush1.bf16.msra.mxu0 %v442
    %461 = vmatprep.subr.bf16.mxu0 0
    %462 = vmatpush1.bf16.msra.mxu0 %v443
    %463 = vmatprep.subr.bf16.mxu0 0
    %464 = vmatpush1.bf16.msra.mxu0 %v444
    %465 = vmatprep.subr.bf16.mxu0 0
    %466 = vmatpush1.bf16.msra.mxu0 %v445
    %467 = vmatprep.subr.bf16.mxu0 0
    %468 = vmatpush1.bf16.msra.mxu0 %v446
    %469 = vmatprep.subr.bf16.mxu0 0
    %470 = vmatpush1.bf16.msra.mxu0 %v447
    %471 = vmatprep.subr.bf16.mxu0 0
    %472 = vmatpush1.bf16.msra.mxu0 %v448
    %473 = vmatprep.subr.bf16.mxu0 0
    %474 = vmatpush1.bf16.msra.mxu0 0
    %475 = vmatprep.subr.bf16.mxu0 0
    %476 = vmatpush1.bf16.msra.mxu0 0
    %477 = vmatprep.subr.bf16.mxu0 0
    %478 = vmatpush1.bf16.msra.mxu0 0
    %479 = vmatprep.subr.bf16.mxu0 0
    %480 = vmatpush1.bf16.msra.mxu0 0
    %481 = vmatprep.subr.bf16.mxu0 0
    %482 = vmatpush1.bf16.msra.mxu0 0
    %483 = vmatprep.subr.bf16.mxu0 0
    %484 = vmatpush1.bf16.msra.mxu0 0
    %485 = vmatprep.subr.bf16.mxu0 0
    %486 = vmatpush1.bf16.msra.mxu0 0
    %487 = vmatprep.subr.bf16.mxu0 0
    %488 = vmatpush1.bf16.msra.mxu0 0
    %489 = vmatprep.mubr.bf16.mxu0 0
    %490 = vmatmul.mubr.bf16.gmra.mrb[0].mxu0 %v385
    %v491 = vpop.f32.mrb[0].mxu0
    %v492 = vadd.f32 %v407, %v491
    %v493 = vpop.f32.mrb[0].mxu0
    %v494 = vpop.f32.mrb[0].mxu0
    %v495 = vadd.f32 %v407, %v494
    %v496 = vpop.f32.mrb[0].mxu0
    %497 = vdwg.mxu0
    %v498 = vmul.f32 %v492, %v492
    %v499 = vmul.f32 %v495, %v495
    %v500 = vmul.f32 %v492, %v498
    %v501 = vmul.f32 %v495, %v499
    %v502 = vmul.f32 %v500, 0.044715
    %v503 = vmul.f32 %v501, 0.044715
    %v504 = vadd.f32 %v492, %v502
    %v505 = vadd.f32 %v495, %v503
    %v506 = vmul.f32 %v504, 0.7978846
    %v507 = vmul.f32 %v505, 0.7978846
    %v508 = vtanh.pop %v506
    %v509 = vtanh.pop %v507
    %v510 = vadd.f32 %v508, 1.0
    %v511 = vadd.f32 %v509, 1.0
    %v512 = vmul.f32 %v510, 0.5
    %v513 = vmul.f32 %v511, 0.5
    %v514 = vmul.f32 %v492, %v512
    %v515 = vmul.f32 %v495, %v513
    %v516 = vpack.c.bf16 %v515, %v514
    %v517 = vld [vmem:[#allocation10] sm:$0xf]
    %v518 = vld [vmem:[#allocation10 + $0x4] sm:$0xf]
    %v519 = vld [vmem:[#allocation10 + $0x8] sm:$0xf]
    %v520 = vld [vmem:[#allocation10 + $0xc] sm:$0xf]
    %v521 = vld [vmem:[#allocation10 + $0x10] sm:$0xf]
    %v522 = vld [vmem:[#allocation10 + $0x14] sm:$0xf]
    %v523 = vld [vmem:[#allocation10 + $0x18] sm:$0xf]
    %v524 = vld [vmem:[#allocation10 + $0x1c] sm:$0xf]
    %v525 = vld [vmem:[#allocation10 + $0x20] sm:$0xf]
    %v526 = vld [vmem:[#allocation10 + $0x24] sm:$0xf]
    %v527 = vld [vmem:[#allocation10 + $0x28] sm:$0xf]
    %v528 = vld [vmem:[#allocation10 + $0x2c] sm:$0xf]
    %v529 = vld [vmem:[#allocation10 + $0x30] sm:$0xf]
    %v530 = vld [vmem:[#allocation10 + $0x34] sm:$0xf]
    %v531 = vld [vmem:[#allocation10 + $0x38] sm:$0xf]
    %v532 = vld [vmem:[#allocation10 + $0x3c] sm:$0xf]
    %v533 = vld [vmem:[%s10] sm:$0x1]
    %v535 = vlaneseq
    %v536 = vshrl.u32 %v535, 7
    %v537 = vsub.s32 0, %v536
    %v538 = vrot.slane %v533, %v537
    %v556 = vunpack.c.l.b16 %v517
    %v557 = vunpack.c.l.b16 %v518
    %v558 = vunpack.c.l.b16 %v519
    %v559 = vunpack.c.l.b16 %v520
    %v560 = vunpack.c.l.b16 %v521
    %v561 = vunpack.c.l.b16 %v522
    %v562 = vunpack.c.l.b16 %v523
    %v563 = vunpack.c.l.b16 %v524
    %v564 = vunpack.c.l.b16 %v525
    %v565 = vunpack.c.l.b16 %v526
    %v566 = vunpack.c.l.b16 %v527
    %v567 = vunpack.c.l.b16 %v528
    %v568 = vunpack.c.l.b16 %v529
    %v569 = vunpack.c.l.b16 %v530
    %v570 = vunpack.c.l.b16 %v531
    %v571 = vunpack.c.l.b16 %v532
    %v572 = vpack.c.b16 %v557, %v556
    %v573 = vpack.c.b16 %v559, %v558
    %v574 = vpack.c.b16 %v561, %v560
    %v575 = vpack.c.b16 %v563, %v562
    %v576 = vpack.c.b16 %v565, %v564
    %v577 = vpack.c.b16 %v567, %v566
    %v578 = vpack.c.b16 %v569, %v568
    %v579 = vpack.c.b16 %v571, %v570
    %588 = vmatprep.subr.bf16.mxu0 0
    %589 = vmatpush1.bf16.msra.mxu0 %v572
    %590 = vmatprep.subr.bf16.mxu0 0
    %591 = vmatpush1.bf16.msra.mxu0 %v573
    %592 = vmatprep.subr.bf16.mxu0 0
    %593 = vmatpush1.bf16.msra.mxu0 %v574
    %594 = vmatprep.subr.bf16.mxu0 0
    %595 = vmatpush1.bf16.msra.mxu0 %v575
    %596 = vmatprep.subr.bf16.mxu0 0
    %597 = vmatpush1.bf16.msra.mxu0 %v576
    %598 = vmatprep.subr.bf16.mxu0 0
    %599 = vmatpush1.bf16.msra.mxu0 %v577
    %600 = vmatprep.subr.bf16.mxu0 0
    %601 = vmatpush1.bf16.msra.mxu0 %v578
    %602 = vmatprep.subr.bf16.mxu0 0
    %603 = vmatpush1.bf16.msra.mxu0 %v579
    %604 = vmatprep.subr.bf16.mxu0 0
    %605 = vmatpush1.bf16.msra.mxu0 0
    %606 = vmatprep.subr.bf16.mxu0 0
    %607 = vmatpush1.bf16.msra.mxu0 0
    %608 = vmatprep.subr.bf16.mxu0 0
    %609 = vmatpush1.bf16.msra.mxu0 0
    %610 = vmatprep.subr.bf16.mxu0 0
    %611 = vmatpush1.bf16.msra.mxu0 0
    %612 = vmatprep.subr.bf16.mxu0 0
    %613 = vmatpush1.bf16.msra.mxu0 0
    %614 = vmatprep.subr.bf16.mxu0 0
    %615 = vmatpush1.bf16.msra.mxu0 0
    %616 = vmatprep.subr.bf16.mxu0 0
    %617 = vmatpush1.bf16.msra.mxu0 0
    %618 = vmatprep.subr.bf16.mxu0 0
    %619 = vmatpush1.bf16.msra.mxu0 0
    %620 = vmatprep.mubr.bf16.mxu0 0
    %621 = vmatmul.mubr.bf16.gmra.mrb[0].mxu0 %v516
    %v622 = vpop.f32.mrb[0].mxu0
    %v623 = vadd.f32 %v538, %v622
    %v624 = vpop.f32.mrb[0].mxu0
    %v625 = vpop.f32.mrb[0].mxu0
    %v626 = vadd.f32 %v538, %v625
    %v627 = vpop.f32.mrb[0].mxu0
    %628 = vdwg.mxu0
    %629 = vst [vmem:[#allocation11] sm:$0xff] %v623
    %630 = vst [vmem:[#allocation11 + $0x8] sm:$0xff] %v626
    // Predicated region
    $region66: #{tpu_custom_call.1} parent=1 // pred_check
      _
    $region67: #{tpu_custom_call.1} parent=1 // pred_check_branch
      %632 = sbr.rel (0) target = $region69
    $region68: #{tpu_custom_call.1} parent=1 // pred_region
      %s634 = ssub.s32 256, 256
      %635 = vsyncadd [#allocation4], %s634
      %s636 = sshll.u32 [#allocation11], 4
      %s637 = int_to_ptr.vmem [resolvable:$true] %s636
      %642 = dma.vmem_to_hbm [thread:$0]  %s637, 256, %s11, [#allocation4], 128, 128, 8
    $region69: #{tpu_custom_call.1} parent=1 // pred_fallthru
      _
    // Predicated region
    $region70: #{tpu_custom_call.1} parent=1 // pred_check
      _
    $region71: #{tpu_custom_call.1} parent=1 // pred_check_branch
      %644 = sbr.rel (0) target = $region73
    $region72: #{tpu_custom_call.1} parent=1 // pred_region
      %645 = dma.done [#allocation4], 256
    $region73: #{tpu_custom_call.1} parent=1 // pred_fallthru
      _
    %646 = vsyncpa [#allocation3], 1
    %647 = vsyncpa [#allocation6], 1
    %648 = vsyncpa [#allocation9], 1
    %649 = vsyncpa [#allocation4], 1

</llo_original>
